<compile_context>
chip_gen: v5e
topology: v5e:2x2
jax: 0.10.0
libtpu: 0.0.40
codegen_flags: <defaults>
</compile_context>

<pallas_src>
from functools import partial

import jax
import jax.numpy as jnp
from jax.experimental import pallas as pl
from jax.experimental.pallas import tpu as pltpu


# ---------------------------------------------------------------------------
# kernels
# ---------------------------------------------------------------------------
def _fusion_kernel(w_ref, c_ref, s_ref, o_ref, *, hw):
    """Single-pass AdaIN + blend. Block = (1, C_tile, HW_pad), HW fully resident."""
    f32 = jnp.float32
    n = f32(hw)
    inv_nm1 = f32(1.0 / max(hw - 1, 1))          # unbiased variance (torch default)
    eps = f32(1e-5)

    hw_pad = c_ref.shape[-1]
    masked = hw_pad != hw                        # static: lane padding present?
    if masked:
        lane = jax.lax.broadcasted_iota(jnp.int32, c_ref.shape, 2)
        valid = lane < hw

    # content stats: two-pass variance on the resident tile (zero padding keeps
    # the sums exact; centered terms are masked out explicitly).
    c = c_ref[...].astype(f32)
    c_mean = jnp.sum(c, axis=-1, keepdims=True) / n
    c_cent = c - c_mean
    if masked:
        c_cent = jnp.where(valid, c_cent, f32(0.0))
    c_var = jnp.maximum(jnp.sum(c_cent * c_cent, axis=-1, keepdims=True) * inv_nm1, f32(0.0))
    c_std = jnp.sqrt(c_var + eps)

    # style stats (the content f32 copy is dead here -> bounded live ranges).
    s = s_ref[...].astype(f32)
    s_mean = jnp.sum(s, axis=-1, keepdims=True) / n
    s_cent = s - s_mean
    if masked:
        s_cent = jnp.where(valid, s_cent, f32(0.0))
    s_var = jnp.maximum(jnp.sum(s_cent * s_cent, axis=-1, keepdims=True) * inv_nm1, f32(0.0))
    s_std = jnp.sqrt(s_var + eps)

    # fold AdaIN + blend into one per-channel affine on the (1, C_tile, 1) stats.
    w = w_ref[0].astype(f32)
    scale = s_std / (c_std + f32(1e-8))
    coef_a = (f32(1.0) - w) + w * scale
    coef_b = w * (s_mean - c_mean * scale)

    # re-read content for the final fused mul+add instead of holding the f32
    # copy live from the top of the body (less VMEM / vreg pressure).
    o_ref[...] = (c_ref[...].astype(f32) * coef_a + coef_b).astype(o_ref.dtype)


def _stats_kernel(w_ref, c_ref, s_ref, coef_ref, csum, csq, ssum, ssq, *, hw, th):
    """Fallback pass 1: accumulate per-channel sum / sumsq over HW tiles and
    emit the per-channel affine coefficients (A, Bk) on the last HW step."""
    f32 = jnp.float32
    h = pl.program_id(2)

    @pl.when(h == 0)
    def _():
        csum[...] = jnp.zeros_like(csum)
        csq[...] = jnp.zeros_like(csq)
        ssum[...] = jnp.zeros_like(ssum)
        ssq[...] = jnp.zeros_like(ssq)

    masked = (hw % th) != 0                      # static: ragged / padded HW tail?
    if masked:
        lane = jax.lax.broadcasted_iota(jnp.int32, c_ref.shape, 2) + h * th
        valid = lane < hw

    c = c_ref[...].astype(f32)
    if masked:
        c = jnp.where(valid, c, f32(0.0))
    csum[...] += jnp.sum(c, axis=-1, keepdims=True)
    csq[...] += jnp.sum(c * c, axis=-1, keepdims=True)

    s = s_ref[...].astype(f32)
    if masked:
        s = jnp.where(valid, s, f32(0.0))
    ssum[...] += jnp.sum(s, axis=-1, keepdims=True)
    ssq[...] += jnp.sum(s * s, axis=-1, keepdims=True)

    @pl.when(h == pl.num_programs(2) - 1)
    def _():
        n = f32(hw)
        inv_nm1 = f32(1.0 / max(hw - 1, 1))
        eps = f32(1e-5)
        c_mean = csum[...] / n
        c_var = jnp.maximum((csq[...] - n * c_mean * c_mean) * inv_nm1, f32(0.0))
        c_std = jnp.sqrt(c_var + eps)
        s_mean = ssum[...] / n
        s_var = jnp.maximum((ssq[...] - n * s_mean * s_mean) * inv_nm1, f32(0.0))
        s_std = jnp.sqrt(s_var + eps)
        w = w_ref[0].astype(f32)
        scale = s_std / (c_std + f32(1e-8))
        coef_ref[:, :, 0:1] = (f32(1.0) - w) + w * scale
        coef_ref[:, :, 1:2] = w * (s_mean - c_mean * scale)


def _affine_kernel(coef_ref, c_ref, o_ref):
    """Fallback pass 2: purely elementwise out = content * A + Bk."""
    coef = coef_ref[...]                         # (1, C_tile, 2) f32
    a = coef[:, :, 0:1]
    b = coef[:, :, 1:2]
    o_ref[...] = (c_ref[...].astype(jnp.float32) * a + b).astype(o_ref.dtype)


# ---------------------------------------------------------------------------
# tiling / VMEM budget helpers
# ---------------------------------------------------------------------------
def _vmem_capacity_bytes():
    try:
        cap = int(pltpu.get_tpu_info().vmem_capacity_bytes)
        if cap > 0:
            return cap
    except Exception:
        pass
    return 64 << 20          # conservative fallback = v7x per-TensorCore VMEM


def _sublane_pack(itemsize):
    # 32-bit dtypes pack 8 rows per vreg, bf16 -> 16, int8/fp8 -> 32.
    return max(8, 32 // max(1, itemsize))


def _cdiv(a, b):
    return -(-a // b)


def _pick_channel_tile(B, C, hw_pad, itemsize, block_budget, min_steps=8):
    """Largest channel tile whose footprint (6 double-buffered I/O blocks +
    ~4 full-tile f32 temporaries) fits `block_budget`, rounded to the dtype's
    sublane packing, and shrunk (never below ~1 MiB / array) so the grid has
    >= `min_steps` steps for pipeline depth / megacore sharding."""
    pack = _sublane_pack(itemsize)
    per_row = hw_pad * (6 * itemsize + 4 * 4)
    tc = min(C, max(1, block_budget // per_row))

    min_rows = max(pack, _cdiv(1 << 20, hw_pad * itemsize))    # keep >= ~1 MiB / array
    want_blocks = _cdiv(min_steps, max(1, B))
    if want_blocks > 1:
        tc = min(tc, max(min_rows, _cdiv(C, want_blocks)))

    if tc >= C:
        return C
    return max(pack, (tc // pack) * pack)


def _pick_hw_tile(rows, hw_pad, itemsize, block_budget):
    """HW tile (multiple of 128) for the fallback kernels: 2 streamed arrays x
    2 pipeline buffers + ~2 full-tile f32 temporaries."""
    per_col = max(1, rows * (4 * itemsize + 2 * 4))
    th = (block_budget // per_col) // 128 * 128
    return int(min(hw_pad, max(128, th)))


# ---------------------------------------------------------------------------
# public wrapper
# ---------------------------------------------------------------------------
def fusion(content_feat, style_feat, style_weight=None, *, two_pass=None, hw_tile=None):
    """Pallas TPU port of Fusion.forward. content/style: [B, C, H, W] (NCHW)."""
    assert content_feat.shape == style_feat.shape, "content/style shapes must match"
    B, C, H, W = content_feat.shape
    HW = H * W

    if style_weight is None:
        # TODO(synk): PyTorch draws torch.rand(1) fresh per call; here we use a fixed key.
        style_weight = jax.random.uniform(jax.random.PRNGKey(0), ())
    w_arr = jnp.asarray(style_weight, jnp.float32).reshape(1)

    itemsize = jnp.dtype(content_feat.dtype).itemsize
    pack = _sublane_pack(itemsize)

    # pad HW to a multiple of 128 -> lane-dense, unmasked loads/stores.
    HWp = _cdiv(HW, 128) * 128
    c2 = content_feat.reshape(B, C, HW)
    s2 = style_feat.reshape(B, C, HW)
    if HWp != HW:
        pad = ((0, 0), (0, 0), (0, HWp - HW))
        c2 = jnp.pad(c2, pad)
        s2 = jnp.pad(s2, pad)

    # generation-aware VMEM budget (v5e/v6e: 128 MiB physical, v7x: 64 MiB/TC).
    vmem_cap = _vmem_capacity_bytes()
    vmem_limit = int(min(vmem_cap * 3 // 4, 96 << 20))
    block_budget = vmem_limit * 7 // 8

    per_row = HWp * (6 * itemsize + 4 * 4)
    if two_pass is None:
        two_pass = min(C, pack) * per_row > block_budget

    out_shape = jax.ShapeDtypeStruct((B, C, HWp), content_feat.dtype)
    smem_spec = pl.BlockSpec(memory_space=pltpu.MemorySpace.SMEM)

    if not two_pass:
        # -------- single pass: full HW resident per block -------------------
        tc = _pick_channel_tile(B, C, HWp, itemsize, block_budget)
        blk = pl.BlockSpec((1, tc, HWp), lambda b, cb: (b, cb, 0))
        # NOTE: if C % tc != 0 the ragged last channel block reads junk rows;
        # their (garbage) stats only feed output rows that Pallas drops.
        out = pl.pallas_call(
            partial(_fusion_kernel, hw=HW),
            out_shape=out_shape,
            grid=(B, pl.cdiv(C, tc)),
            in_specs=[smem_spec, blk, blk],
            out_specs=blk,
            compiler_params=pltpu.CompilerParams(
                dimension_semantics=("parallel", "parallel"),
                vmem_limit_bytes=vmem_limit),
        )(w_arr, c2, s2)
    else:
        # -------- fallback: stats over HW tiles, then elementwise affine ----
        tc = min(C, pack)
        th = hw_tile if hw_tile is not None else _pick_hw_tile(tc, HWp, itemsize, block_budget)
        rb = pl.BlockSpec((1, tc, th), lambda b, cb, h: (b, cb, h))
        coef_blk = pl.BlockSpec((1, tc, 2), lambda b, cb, h: (b, cb, 0))

        coef = pl.pallas_call(
            partial(_stats_kernel, hw=HW, th=th),
            out_shape=jax.ShapeDtypeStruct((B, C, 2), jnp.float32),
            grid=(B, pl.cdiv(C, tc), pl.cdiv(HWp, th)),
            in_specs=[smem_spec, rb, rb],
            out_specs=coef_blk,
            scratch_shapes=[pltpu.VMEM((1, tc, 1), jnp.float32)] * 4,
            compiler_params=pltpu.CompilerParams(
                dimension_semantics=("parallel", "parallel", "arbitrary"),
                vmem_limit_bytes=vmem_limit),
        )(w_arr, c2, s2)

        out = pl.pallas_call(
            _affine_kernel,
            out_shape=out_shape,
            grid=(B, pl.cdiv(C, tc), pl.cdiv(HWp, th)),
            in_specs=[coef_blk, rb],
            out_specs=rb,
            compiler_params=pltpu.CompilerParams(
                dimension_semantics=("parallel", "parallel", "parallel"),
                vmem_limit_bytes=vmem_limit),
        )(coef, c2)

    if HWp != HW:
        out = out[:, :, :HW]
    return out.reshape(B, C, H, W)


# ---------------------------------------------------------------------------
# pure-JAX reference (matches the PyTorch module)
# ---------------------------------------------------------------------------
def _fusion_ref(content_feat, style_feat, style_weight, eps=1e-5):
    B, C, H, W = content_feat.shape
    c = content_feat.reshape(B, C, -1)
    s = style_feat.reshape(B, C, -1)
    c_mean = c.mean(-1)[:, :, None, None]
    c_std = jnp.sqrt(c.var(-1, ddof=1) + eps)[:, :, None, None]
    s_mean = s.mean(-1)[:, :, None, None]
    s_std = jnp.sqrt(s.var(-1, ddof=1) + eps)[:, :, None, None]
    normalized = (content_feat - c_mean) / (c_std + 1e-8)
    adain = normalized * s_std + s_mean
    return (1.0 - style_weight) * content_feat + style_weight * adain


if __name__ == "__main__":
    key = jax.random.PRNGKey(0)
    kc, ks, kc2, ks2 = jax.random.split(key, 4)

    # 1) small NCHW, single-pass path (full-HW, lane-dense blocks).
    B, C, H, W = 2, 4, 16, 16
    content = jax.random.normal(kc, (B, C, H, W), dtype=jnp.float32)
    style = jax.random.normal(ks, (B, C, H, W), dtype=jnp.float32) * 2.0 + 0.5
    out = fusion(content, style, 0.7)
    jax.block_until_ready(out)
    ref = _fusion_ref(content, style, 0.7)
    assert out.shape == (B, C, H, W)
    assert float(jnp.max(jnp.abs(out - ref))) < 1e-4, "mismatch (single-pass path)"

    # 2) HW not a multiple of 128 -> exercises lane padding + masked stats.
    c_b = jax.random.normal(kc2, (1, 16, 10, 10), dtype=jnp.float32) + 1.5
    s_b = jax.random.normal(ks2, (1, 16, 10, 10), dtype=jnp.float32) * 0.5
    out2 = fusion(c_b, s_b, 0.25)
    jax.block_until_ready(out2)
    ref2 = _fusion_ref(c_b, s_b, 0.25)
    assert float(jnp.max(jnp.abs(out2 - ref2))) < 1e-4, "mismatch (padded-HW path)"

    # 3) force the two-pass fallback (stats + affine) with HW tiling.
    c_c = jax.random.normal(kc, (2, 8, 32, 32), dtype=jnp.float32) * 1.2 + 0.3
    s_c = jax.random.normal(ks, (2, 8, 32, 32), dtype=jnp.float32) * 2.0 - 0.1
    out3 = fusion(c_c, s_c, 0.55, two_pass=True, hw_tile=128)
    jax.block_until_ready(out3)
    ref3 = _fusion_ref(c_c, s_c, 0.55)
    assert float(jnp.max(jnp.abs(out3 - ref3))) < 1e-4, "mismatch (two-pass path)"

    print("KERNEL_OK")
</pallas_src>

<mosaic_0001>
module attributes {stable_mosaic.version = 11 : i64} {
  func.func @_fusion_kernel(%arg0: i32, %arg1: i32, %arg2: memref<1xf32, #tpu.memory_space<smem>>, %arg3: memref<1x4x256xf32, #tpu.memory_space<vmem>>, %arg4: memref<1x4x256xf32, #tpu.memory_space<vmem>>, %arg5: memref<1x4x256xf32, #tpu.memory_space<vmem>>) attributes {dimension_semantics = [#tpu.dimension_semantics<parallel>, #tpu.dimension_semantics<parallel>], iteration_bounds = array<i64: 2, 1>, scalar_prefetch = 0 : i64, scratch_operands = 0 : i64, tpu.core_type = #tpu.core_type<tc>, window_params = [{transform_indices = @transform_0, window_bounds = array<i64: 1>}, {transform_indices = @transform_1, window_bounds = array<i64: 1, 4, 256>}, {transform_indices = @transform_2, window_bounds = array<i64: 1, 4, 256>}, {transform_indices = @transform_3, window_bounds = array<i64: 1, 4, 256>}]} {
    %c0 = arith.constant 0 : index
    %c0_0 = arith.constant 0 : index
    %c0_1 = arith.constant 0 : index
    %0 = vector.load %arg3[%c0, %c0_0, %c0_1] : memref<1x4x256xf32, #tpu.memory_space<vmem>>, vector<1x4x256xf32>
    %cst = arith.constant dense<0.000000e+00> : vector<1x4xf32>
    %1 = vector.multi_reduction <add>, %0, %cst [2] : vector<1x4x256xf32> to vector<1x4xf32>
    %2 = vector.shape_cast %1 : vector<1x4xf32> to vector<1x4x1xf32>
    %cst_2 = arith.constant 2.560000e+02 : f32
    %3 = vector.broadcast %cst_2 : f32 to vector<1x4x1xf32>
    %4 = arith.divf %2, %3 : vector<1x4x1xf32>
    %5 = vector.broadcast %4 : vector<1x4x1xf32> to vector<1x4x256xf32>
    %6 = arith.subf %0, %5 : vector<1x4x256xf32>
    %7 = arith.mulf %6, %6 : vector<1x4x256xf32>
    %cst_3 = arith.constant dense<0.000000e+00> : vector<1x4xf32>
    %8 = vector.multi_reduction <add>, %7, %cst_3 [2] : vector<1x4x256xf32> to vector<1x4xf32>
    %9 = vector.shape_cast %8 : vector<1x4xf32> to vector<1x4x1xf32>
    %cst_4 = arith.constant 0.00392156886 : f32
    %10 = vector.broadcast %cst_4 : f32 to vector<1x4x1xf32>
    %11 = arith.mulf %9, %10 : vector<1x4x1xf32>
    %cst_5 = arith.constant 0.000000e+00 : f32
    %12 = vector.broadcast %cst_5 : f32 to vector<1x4x1xf32>
    %13 = arith.maximumf %11, %12 : vector<1x4x1xf32>
    %cst_6 = arith.constant 9.99999974E-6 : f32
    %14 = vector.broadcast %cst_6 : f32 to vector<1x4x1xf32>
    %15 = arith.addf %13, %14 : vector<1x4x1xf32>
    %16 = math.sqrt %15 : vector<1x4x1xf32>
    %c0_7 = arith.constant 0 : index
    %c0_8 = arith.constant 0 : index
    %c0_9 = arith.constant 0 : index
    %17 = vector.load %arg4[%c0_7, %c0_8, %c0_9] : memref<1x4x256xf32, #tpu.memory_space<vmem>>, vector<1x4x256xf32>
    %cst_10 = arith.constant dense<0.000000e+00> : vector<1x4xf32>
    %18 = vector.multi_reduction <add>, %17, %cst_10 [2] : vector<1x4x256xf32> to vector<1x4xf32>
    %19 = vector.shape_cast %18 : vector<1x4xf32> to vector<1x4x1xf32>
    %cst_11 = arith.constant 2.560000e+02 : f32
    %20 = vector.broadcast %cst_11 : f32 to vector<1x4x1xf32>
    %21 = arith.divf %19, %20 : vector<1x4x1xf32>
    %22 = vector.broadcast %21 : vector<1x4x1xf32> to vector<1x4x256xf32>
    %23 = arith.subf %17, %22 : vector<1x4x256xf32>
    %24 = arith.mulf %23, %23 : vector<1x4x256xf32>
    %cst_12 = arith.constant dense<0.000000e+00> : vector<1x4xf32>
    %25 = vector.multi_reduction <add>, %24, %cst_12 [2] : vector<1x4x256xf32> to vector<1x4xf32>
    %26 = vector.shape_cast %25 : vector<1x4xf32> to vector<1x4x1xf32>
    %cst_13 = arith.constant 0.00392156886 : f32
    %27 = vector.broadcast %cst_13 : f32 to vector<1x4x1xf32>
    %28 = arith.mulf %26, %27 : vector<1x4x1xf32>
    %cst_14 = arith.constant 0.000000e+00 : f32
    %29 = vector.broadcast %cst_14 : f32 to vector<1x4x1xf32>
    %30 = arith.maximumf %28, %29 : vector<1x4x1xf32>
    %cst_15 = arith.constant 9.99999974E-6 : f32
    %31 = vector.broadcast %cst_15 : f32 to vector<1x4x1xf32>
    %32 = arith.addf %30, %31 : vector<1x4x1xf32>
    %33 = math.sqrt %32 : vector<1x4x1xf32>
    %c0_16 = arith.constant 0 : index
    %34 = memref.load %arg2[%c0_16] : memref<1xf32, #tpu.memory_space<smem>>
    %cst_17 = arith.constant 9.99999993E-9 : f32
    %35 = vector.broadcast %cst_17 : f32 to vector<1x4x1xf32>
    %36 = arith.addf %16, %35 : vector<1x4x1xf32>
    %37 = arith.divf %33, %36 : vector<1x4x1xf32>
    %cst_18 = arith.constant 1.000000e+00 : f32
    %38 = arith.subf %cst_18, %34 : f32
    %39 = vector.broadcast %34 : f32 to vector<1x4x1xf32>
    %40 = arith.mulf %39, %37 : vector<1x4x1xf32>
    %41 = vector.broadcast %38 : f32 to vector<1x4x1xf32>
    %42 = arith.addf %41, %40 : vector<1x4x1xf32>
    %43 = arith.mulf %4, %37 : vector<1x4x1xf32>
    %44 = arith.subf %21, %43 : vector<1x4x1xf32>
    %45 = vector.broadcast %34 : f32 to vector<1x4x1xf32>
    %46 = arith.mulf %45, %44 : vector<1x4x1xf32>
    %c0_19 = arith.constant 0 : index
    %c0_20 = arith.constant 0 : index
    %c0_21 = arith.constant 0 : index
    %47 = vector.load %arg3[%c0_19, %c0_20, %c0_21] : memref<1x4x256xf32, #tpu.memory_space<vmem>>, vector<1x4x256xf32>
    %48 = vector.broadcast %42 : vector<1x4x1xf32> to vector<1x4x256xf32>
    %49 = arith.mulf %47, %48 : vector<1x4x256xf32>
    %50 = vector.broadcast %46 : vector<1x4x1xf32> to vector<1x4x256xf32>
    %51 = arith.addf %49, %50 : vector<1x4x256xf32>
    %c0_22 = arith.constant 0 : index
    %c0_23 = arith.constant 0 : index
    %c0_24 = arith.constant 0 : index
    %52 = vector.load %arg5[%c0_22, %c0_23, %c0_24] : memref<1x4x256xf32, #tpu.memory_space<vmem>>, vector<1x4x256xf32>
    tpu.vector_store %arg5[%c0_22, %c0_23, %c0_24], %51 {strides = array<i32>} : memref<1x4x256xf32, #tpu.memory_space<vmem>>, vector<1x4x256xf32>,
    return
  }
  func.func @transform_0(%arg0: i32, %arg1: i32) -> i32 {
    %c0_i32 = arith.constant 0 : i32
    %c0_i32_0 = arith.constant 0 : i32
    return %c0_i32 : i32
  }
  func.func @transform_1(%arg0: i32, %arg1: i32) -> (i32, i32, i32) {
    %c0_i32 = arith.constant 0 : i32
    %c0_i32_0 = arith.constant 0 : i32
    return %arg0, %arg1, %c0_i32 : i32, i32, i32
  }
  func.func @transform_2(%arg0: i32, %arg1: i32) -> (i32, i32, i32) {
    %c0_i32 = arith.constant 0 : i32
    %c0_i32_0 = arith.constant 0 : i32
    return %arg0, %arg1, %c0_i32 : i32, i32, i32
  }
  func.func @transform_3(%arg0: i32, %arg1: i32) -> (i32, i32, i32) {
    %c0_i32 = arith.constant 0 : i32
    %c0_i32_0 = arith.constant 0 : i32
    return %arg0, %arg1, %c0_i32 : i32, i32, i32
  }
}

</mosaic_0001>

<llo_original>
// kernel: tpu_custom_call.1
$region0: #{tpu_custom_call.1}
  #allocation0 [shape = 'u32[]', space=smem, size = 0x4, offset = 0x4, fixed_abs, tag = 'smem constant byte address 0x4 - core index']
  #allocation1 [shape = 'u32[72,128]{1,0:T(1,128)}', space=vmem, size = 0x9000, scoped, tag = 'internal scratch']
  #allocation2 [shape = 'f32[1]{0:T(128)S(6)}', space=smem, size = 0x200, scoped, tag = 'scoped memory for tpu_custom_call.1']
  %s0 = inlined_call_operand.<no memory space> [shape: f32[1], index: 0, kind: input, shape index: {}]
  %s1 = inlined_call_operand.hbm [shape: f32[2,4,256], index: 1, kind: input, shape index: {}]
  %s2 = inlined_call_operand.hbm [shape: f32[2,4,256], index: 2, kind: input, shape index: {}]
  %s3 = inlined_call_operand.hbm [shape: f32[2,4,256], index: 3, kind: output, shape index: {}]
  %s4 = sld [smem:[#allocation0]]
  $region53: #{tpu_custom_call.1} parent=0
    _
  %s6 = ssub.s32 1, %s4
  %s7 = scalar_select 0, %s6, %s4
  %8 = sst [smem:[#allocation2]] %s0
  $region1: #{tpu_custom_call.1} parent=0
    #allocation3 [shape = 'u8[8192]{0}', space=vmem, size = 0x2000, scoped, tag = 'input window, operand 1']
    #allocation4 [shape = 's32[2]{0}', space=sflag, size = 0x8, scoped, tag = 'scoped memory for tpu_custom_call.1']
    #allocation5 [shape = 's32[2]{0}', space=sflag, size = 0x8, scoped, tag = 'scoped memory for tpu_custom_call.1']
    #allocation6 [shape = 'u8[8192]{0}', space=vmem, size = 0x2000, scoped, tag = 'input window, operand 2']
    #allocation7 [shape = 's32[2]{0}', space=sflag, size = 0x8, scoped, tag = 'scoped memory for tpu_custom_call.1']
    #allocation8 [shape = 'u8[8192]{0}', space=vmem, size = 0x2000, scoped, tag = 'output window, operand 0']
    %9 = vsyncpa [#allocation4], 0
    %s10 = scalar_lea.sflag [#allocation4], 1
    %11 = vsyncpa %s10, 0
    %12 = vsyncpa [#allocation7], 0
    %s13 = scalar_lea.sflag [#allocation7], 1
    %14 = vsyncpa %s13, 0
    %15 = vsyncpa [#allocation5], 0
    %s16 = scalar_lea.sflag [#allocation5], 1
    %17 = vsyncpa %s16, 0
    loop: start=0, step=1, limit=4
    $region2: #{tpu_custom_call.1} parent=1 // loop_pre_header
      _
    $region3: #{tpu_custom_call.1} parent=1 // loop_header
      %s19 = sphi 0, %s23
      %p20 = scmp.ge.s32.totalorder %s19, 4
      %s26 = sphi 0, %s38
      %s27 = sphi 0, %s34
      %s28 = sphi 0, %s26
      %s29 = sphi 0, %s27
      %s30 = sphi 0, %s28
      %s31 = sphi 0, %s29
      %s39 = sphi 0, %s39
      %s41 = sphi 0, %s39
      %s42 = sphi 0, %s41
      %s56 = sphi 0, %s42
      %s64 = sphi 0, %s66
      %s67 = sphi 0, %s64
      %s68 = sphi 0, %s67
      %s84 = sphi 0, %s68
      %s92 = sphi 0, %s94
      %s95 = sphi 0, %s92
      %s96 = sphi 0, %s95
      %s112 = sphi 0, %s96
      %s120 = sphi 0, %s122
      %s123 = sphi 0, %s120
      %s124 = sphi 0, %s123
      %s140 = sphi 0, %s124
    $region4: #{tpu_custom_call.1} parent=1 // loop_header_branch
      %22 = sbr.rel (%p20) target = $region8
    $region5: #{tpu_custom_call.1} parent=1 // loop_body
      %s24 = ssub.s32 %s19, 1
      %s25 = ssub.s32 %s19, 2
      %s32 = sadd.s32 1, %s27
      %p33 = scmp.ge.s32.totalorder %s32, 1
      %s34 = scalar_select %p33, 0, %s32
      %s35 = sadd.s32 1, %s26
      %s36 = scalar_select %p33, %s35, %s26
      %p37 = scmp.ge.s32.totalorder %s36, 2
      %s38 = scalar_select %p37, 0, %s36
      %s40 = sadd.s32 %s39, 1
      %p43 = scmp.eq.s32.totalorder %s19, 1
      %p44 = scmp.ne.s32.totalorder %s39, %s41
      %p45 = scmp.eq.s32.totalorder %s19, 0
      %p46 = por %p44, %p45
      %p47 = scmp.ne.s32.totalorder %s39, %s41
      %p48 = scmp.eq.s32.totalorder %s24, 1
      %p49 = por %p47, %p48
      %p50 = scmp.ne.s32.totalorder %s41, %s42
      %p51 = scmp.eq.s32.totalorder %s24, 0
      %p52 = por %p50, %p51
      %p53 = scmp.ne.s32.totalorder %s41, %s42
      %p54 = scmp.eq.s32.totalorder %s25, 1
      %p55 = por %p53, %p54
      %p57 = scmp.ne.s32.totalorder %s42, %s56
      %p58 = scmp.eq.s32.totalorder %s25, 0
      %p59 = por %p57, %p58
      %s60 = ssub.s32 %s26, %s38
      %s61 = ssub.s32 %s27, %s34
      %s62 = sor.u32 %s60, %s61
      %p63 = scmp.eq.s32.totalorder %s62, 0
      %s65 = sadd.s32 %s64, 1
      %s66 = scalar_select %p63, %s64, %s65
      %p69 = pneg %p63
      %p70 = scmp.eq.s32.totalorder %s19, 1
      %p71 = por %p69, %p70
      %p72 = scmp.ne.s32.totalorder %s64, %s67
      %p73 = scmp.eq.s32.totalorder %s19, 0
      %p74 = por %p72, %p73
      %p75 = scmp.ne.s32.totalorder %s64, %s67
      %p76 = scmp.eq.s32.totalorder %s24, 1
      %p77 = por %p75, %p76
      %p78 = scmp.ne.s32.totalorder %s67, %s68
      %p79 = scmp.eq.s32.totalorder %s24, 0
      %p80 = por %p78, %p79
      %p81 = scmp.ne.s32.totalorder %s67, %s68
      %p82 = scmp.eq.s32.totalorder %s25, 1
      %p83 = por %p81, %p82
      %p85 = scmp.ne.s32.totalorder %s68, %s84
      %p86 = scmp.eq.s32.totalorder %s25, 0
      %p87 = por %p85, %p86
      %s88 = ssub.s32 %s26, %s38
      %s89 = ssub.s32 %s27, %s34
      %s90 = sor.u32 %s88, %s89
      %p91 = scmp.eq.s32.totalorder %s90, 0
      %s93 = sadd.s32 %s92, 1
      %s94 = scalar_select %p91, %s92, %s93
      %p97 = pneg %p91
      %p98 = scmp.eq.s32.totalorder %s19, 1
      %p99 = por %p97, %p98
      %p100 = scmp.ne.s32.totalorder %s92, %s95
      %p101 = scmp.eq.s32.totalorder %s19, 0
      %p102 = por %p100, %p101
      %p103 = scmp.ne.s32.totalorder %s92, %s95
      %p104 = scmp.eq.s32.totalorder %s24, 1
      %p105 = por %p103, %p104
      %p106 = scmp.ne.s32.totalorder %s95, %s96
      %p107 = scmp.eq.s32.totalorder %s24, 0
      %p108 = por %p106, %p107
      %p109 = scmp.ne.s32.totalorder %s95, %s96
      %p110 = scmp.eq.s32.totalorder %s25, 1
      %p111 = por %p109, %p110
      %p113 = scmp.ne.s32.totalorder %s96, %s112
      %p114 = scmp.eq.s32.totalorder %s25, 0
      %p115 = por %p113, %p114
      %s116 = ssub.s32 %s26, %s38
      %s117 = ssub.s32 %s27, %s34
      %s118 = sor.u32 %s116, %s117
      %p119 = scmp.eq.s32.totalorder %s118, 0
      %s121 = sadd.s32 %s120, 1
      %s122 = scalar_select %p119, %s120, %s121
      %p125 = pneg %p119
      %p126 = scmp.eq.s32.totalorder %s19, 1
      %p127 = por %p125, %p126
      %p128 = scmp.ne.s32.totalorder %s120, %s123
      %p129 = scmp.eq.s32.totalorder %s19, 0
      %p130 = por %p128, %p129
      %p131 = scmp.ne.s32.totalorder %s120, %s123
      %p132 = scmp.eq.s32.totalorder %s24, 1
      %p133 = por %p131, %p132
      %p134 = scmp.ne.s32.totalorder %s123, %s124
      %p135 = scmp.eq.s32.totalorder %s24, 0
      %p136 = por %p134, %p135
      %p137 = scmp.ne.s32.totalorder %s123, %s124
      %p138 = scmp.eq.s32.totalorder %s25, 1
      %p139 = por %p137, %p138
      %p141 = scmp.ne.s32.totalorder %s124, %s140
      %p142 = scmp.eq.s32.totalorder %s25, 0
      %p143 = por %p141, %p142
      %p144 = scmp.le.s32.totalorder 1, %s19
      %p145 = scmp.lt.s32.totalorder %s19, 3
      %p146 = pnand %p144, %p145
      %p147 = pneg %p146
      // Predicated region
      $region9: #{tpu_custom_call.1} parent=5 // pred_check
        _
      $region10: #{tpu_custom_call.1} parent=5 // pred_check_branch
        %149 = sbr.rel (%p146) target = $region12
      $region11: #{tpu_custom_call.1} parent=5 // pred_region
        %s150 = ssub.s32 %s19, 1
        // Predicated region
        $region13: #{tpu_custom_call.1} parent=11 // pred_check
          %p151 = pneg %p52
        $region14: #{tpu_custom_call.1} parent=11 // pred_check_branch
          %153 = sbr.rel (%p151) target = $region16
        $region15: #{tpu_custom_call.1} parent=11 // pred_region
          _
        $region16: #{tpu_custom_call.1} parent=11 // pred_fallthru
          _
      $region12: #{tpu_custom_call.1} parent=5 // pred_fallthru
        _
      %p154 = scmp.lt.s32.totalorder %s19, 2
      // Predicated region
      $region17: #{tpu_custom_call.1} parent=5 // pred_check
        %p155 = pneg %p154
      $region18: #{tpu_custom_call.1} parent=5 // pred_check_branch
        %157 = sbr.rel (%p155) target = $region20
      $region19: #{tpu_custom_call.1} parent=5 // pred_region
        // Predicated region
        $region21: #{tpu_custom_call.1} parent=19 // pred_check
          %p158 = pneg %p74
        $region22: #{tpu_custom_call.1} parent=19 // pred_check_branch
          %160 = sbr.rel (%p158) target = $region24
        $region23: #{tpu_custom_call.1} parent=19 // pred_region
          %s161 = sand.u32 %s64, 1
          %s162 = scalar_lea.sflag [#allocation4], %s161
          %s163 = sand.u32 %s64, 1
          %s164 = smul.addr %s163, 8
          %s165 = scalar_lea.vmem [#allocation3], %s164
          %167 = vsyncadd %s162, 0
          %s168 = smul.addr %s27, 2
          %s169 = smul.addr %s26, 2
          %s170 = sadd.s32 %s168, %s169
          %s171 = smul.addr %s170, 4
          %s172 = scalar_lea.hbm %s1, %s171
          %s174 = sshll.u32 %s172, 4
          %s175 = int_to_ptr.hbm [resolvable:$true] %s174
          %s176 = sshll.u32 %s165, 4
          %s177 = int_to_ptr.vmem [resolvable:$true] %s176
          %179 = dma.hbm_to_vmem [thread:$0]  %s175, 128, %s177, %s162
        $region24: #{tpu_custom_call.1} parent=19 // pred_fallthru
          _
        // Predicated region
        $region25: #{tpu_custom_call.1} parent=19 // pred_check
          %p180 = pneg %p102
        $region26: #{tpu_custom_call.1} parent=19 // pred_check_branch
          %182 = sbr.rel (%p180) target = $region28
        $region27: #{tpu_custom_call.1} parent=19 // pred_region
          %s183 = sand.u32 %s92, 1
          %s184 = scalar_lea.sflag [#allocation7], %s183
          %s185 = sand.u32 %s92, 1
          %s186 = smul.addr %s185, 8
          %s187 = scalar_lea.vmem [#allocation6], %s186
          %189 = vsyncadd %s184, 0
          %s190 = smul.addr %s27, 2
          %s191 = smul.addr %s26, 2
          %s192 = sadd.s32 %s190, %s191
          %s193 = smul.addr %s192, 4
          %s194 = scalar_lea.hbm %s2, %s193
          %s196 = sshll.u32 %s194, 4
          %s197 = int_to_ptr.hbm [resolvable:$true] %s196
          %s198 = sshll.u32 %s187, 4
          %s199 = int_to_ptr.vmem [resolvable:$true] %s198
          %201 = dma.hbm_to_vmem [thread:$0]  %s197, 128, %s199, %s184
        $region28: #{tpu_custom_call.1} parent=19 // pred_fallthru
          _
      $region20: #{tpu_custom_call.1} parent=5 // pred_fallthru
        _
      %p202 = scmp.le.s32.totalorder 1, %s19
      %p203 = scmp.lt.s32.totalorder %s19, 3
      %p204 = pnand %p202, %p203
      %p205 = pneg %p204
      // Predicated region
      $region29: #{tpu_custom_call.1} parent=5 // pred_check
        _
      $region30: #{tpu_custom_call.1} parent=5 // pred_check_branch
        %207 = sbr.rel (%p204) target = $region32
      $region31: #{tpu_custom_call.1} parent=5 // pred_region
        %s208 = ssub.s32 %s19, 1
        %s209 = sand.u32 %s67, 1
        %s210 = scalar_lea.sflag [#allocation4], %s209
        %s211 = sand.u32 %s67, 1
        %s212 = smul.addr %s211, 8
        %s213 = scalar_lea.vmem [#allocation3], %s212
        // Predicated region
        $region33: #{tpu_custom_call.1} parent=31 // pred_check
          %p214 = pneg %p80
        $region34: #{tpu_custom_call.1} parent=31 // pred_check_branch
          %216 = sbr.rel (%p214) target = $region36
        $region35: #{tpu_custom_call.1} parent=31 // pred_region
          %218 = dma.done %s210, 128
        $region36: #{tpu_custom_call.1} parent=31 // pred_fallthru
          _
        %s219 = sand.u32 %s95, 1
        %s220 = scalar_lea.sflag [#allocation7], %s219
        %s221 = sand.u32 %s95, 1
        %s222 = smul.addr %s221, 8
        %s223 = scalar_lea.vmem [#allocation6], %s222
        // Predicated region
        $region37: #{tpu_custom_call.1} parent=31 // pred_check
          %p224 = pneg %p108
        $region38: #{tpu_custom_call.1} parent=31 // pred_check_branch
          %226 = sbr.rel (%p224) target = $region40
        $region39: #{tpu_custom_call.1} parent=31 // pred_region
          %228 = dma.done %s220, 128
        $region40: #{tpu_custom_call.1} parent=31 // pred_fallthru
          _
        %p229 = pneg %p52
        %p230 = pneg %p49
        %s231 = sand.u32 %s67, 1
        %s232 = scalar_lea.sflag [#allocation4], %s231
        %s233 = sand.u32 %s67, 1
        %s234 = smul.addr %s233, 8
        %s235 = scalar_lea.vmem [#allocation3], %s234
        %p236 = pneg %p80
        %p237 = pneg %p77
        %s238 = sand.u32 %s95, 1
        %s239 = scalar_lea.sflag [#allocation7], %s238
        %s240 = sand.u32 %s95, 1
        %s241 = smul.addr %s240, 8
        %s242 = scalar_lea.vmem [#allocation6], %s241
        %p243 = pneg %p108
        %p244 = pneg %p105
        %p245 = pneg %p136
        %p246 = pneg %p133
        %s247 = sand.u32 %s123, 1
        %s248 = scalar_lea.sflag [#allocation5], %s247
        %s249 = sand.u32 %s123, 1
        %s250 = smul.addr %s249, 8
        %s251 = scalar_lea.vmem [#allocation8], %s250
        %v252 = vld [vmem:[%s213] sm:$0xff]
        %254 = vst [vmem:[#allocation1] ss:$2 sm:$0xff] %v252
        %v255 = vld.sshfl [vmem:[#allocation1] sm:$0xff pattern:$0x75316420]
        %v256 = vld.sshfl [vmem:[#allocation1 + $0x8] sm:$0xff pattern:$0x75316420]
        %vm259 = vcmask 1043456
        %v260 = vsel %vm259, %v255, 0.0
        %v261 = vsel %vm259, %v256, 0.0
        %v262 = vadd.f32 %v260, %v261
        %263 = vadd.xlane.f32.xlu0 %v262
        %v264 = vpop.xlane.xlu0 %263
        %v265 = vrcp.pop 256.0
        %v266 = vmul.f32 256.0, %v265
        %v267 = vsub.f32 1.0, %v266
        %v268 = vmul.f32 %v265, %v267
        %v269 = vadd.f32 %v265, %v268
        %vm270 = vweird.f32 %v265
        %v271 = vsel %vm270, %v265, %v269
        %v272 = vmul.f32 %v264, %v271
        %v275 = vunpack.c.l.s4 839922192
        %v276 = vunpack.c.0.s8 %v275
        %v277 = vperm.slane %v272, %v276
        %v279 = vsub.f32 %v252, %v277
        %v280 = vmul.f32 %v279, %v279
        %282 = vst [vmem:[#allocation1] ss:$2 sm:$0xff] %v280
        %v283 = vld.sshfl [vmem:[#allocation1] sm:$0xff pattern:$0x75316420]
        %v284 = vld.sshfl [vmem:[#allocation1 + $0x8] sm:$0xff pattern:$0x75316420]
        %v287 = vsel %vm259, %v283, 0.0
        %v288 = vsel %vm259, %v284, 0.0
        %v289 = vadd.f32 %v287, %v288
        %290 = vadd.xlane.f32.xlu0 %v289
        %v291 = vpop.xlane.xlu0 %290
        %v292 = vmul.f32 %v291, 0.003921569
        %v293 = vmax.f32 %v292, 0.0
        %v294 = vadd.f32 %v293, 1e-05
        %v295 = vrsqrt.pop %v294
        %v296 = vmul.f32 %v295, %v294
        %v297 = vmul.f32 %v296, %v295
        %v298 = vmul.f32 0.5, %v297
        %v299 = vsub.f32 1.5, %v298
        %v300 = vmul.f32 %v295, %v299
        %v301 = vmul.f32 %v294, %v300
        %vm302 = vcmp.eq.f32.partialorder %v294, inf
        %v303 = vsel %vm302, %v294, %v301
        %vm304 = vcmp.eq.f32.partialorder %v294, 0.0
        %v305 = vand.u32 %v294, 2147483648
        %v306 = vsel %vm304, %v305, %v303
        %v307 = vld [vmem:[%s223] sm:$0xff]
        %309 = vst [vmem:[#allocation1] ss:$2 sm:$0xff] %v307
        %v310 = vld.sshfl [vmem:[#allocation1] sm:$0xff pattern:$0x75316420]
        %v311 = vld.sshfl [vmem:[#allocation1 + $0x8] sm:$0xff pattern:$0x75316420]
        %v314 = vsel %vm259, %v310, 0.0
        %v315 = vsel %vm259, %v311, 0.0
        %v316 = vadd.f32 %v314, %v315
        %317 = vadd.xlane.f32.xlu0 %v316
        %v318 = vpop.xlane.xlu0 %317
        %v319 = vmul.f32 %v318, %v271
        %v322 = vunpack.c.l.s4 839922192
        %v323 = vunpack.c.0.s8 %v322
        %v324 = vperm.slane %v319, %v323
        %v326 = vsub.f32 %v307, %v324
        %v327 = vmul.f32 %v326, %v326
        %329 = vst [vmem:[#allocation1] ss:$2 sm:$0xff] %v327
        %v330 = vld.sshfl [vmem:[#allocation1] sm:$0xff pattern:$0x75316420]
        %v331 = vld.sshfl [vmem:[#allocation1 + $0x8] sm:$0xff pattern:$0x75316420]
        %v334 = vsel %vm259, %v330, 0.0
        %v335 = vsel %vm259, %v331, 0.0
        %v336 = vadd.f32 %v334, %v335
        %337 = vadd.xlane.f32.xlu0 %v336
        %v338 = vpop.xlane.xlu0 %337
        %v339 = vmul.f32 %v338, 0.003921569
        %v340 = vmax.f32 %v339, 0.0
        %v341 = vadd.f32 %v340, 1e-05
        %v342 = vrsqrt.pop %v341
        %v343 = vmul.f32 %v342, %v341
        %v344 = vmul.f32 %v343, %v342
        %v345 = vmul.f32 0.5, %v344
        %v346 = vsub.f32 1.5, %v345
        %v347 = vmul.f32 %v342, %v346
        %v348 = vmul.f32 %v341, %v347
        %vm349 = vcmp.eq.f32.partialorder %v341, inf
        %v350 = vsel %vm349, %v341, %v348
        %vm351 = vcmp.eq.f32.partialorder %v341, 0.0
        %v352 = vand.u32 %v341, 2147483648
        %v353 = vsel %vm351, %v352, %v350
        %s354 = sld [smem:[#allocation2]]
        %v355 = vadd.f32 %v306, 1e-08
        %v356 = vrcp.pop %v355
        %v357 = vmul.f32 %v355, %v356
        %v358 = vsub.f32 1.0, %v357
        %v359 = vmul.f32 %v356, %v358
        %v360 = vadd.f32 %v356, %v359
        %vm361 = vweird.f32 %v355
        %vm362 = vweird.f32 %v356
        %vm363 = vmor %vm361, %vm362
        %v364 = vsel %vm363, %v356, %v360
        %v365 = vand.u32 2147483647, %v355
        %vm366 = vcmp.eq.f32.partialorder %v365, 8.507059e+37
        %v367 = vand.u32 %v355, 2147483648
        %v368 = vor.u32 1.1754944e-38, %v367
        %v369 = vsel %vm366, %v368, %v364
        %v370 = vmul.f32 %v353, %v369
        %s371 = ssub.f32 1.0, %s354
        %v372 = vstv %s354
        %v373 = vmul.f32 %v372, %v370
        %v374 = vstv %s371
        %v375 = vadd.f32 %v374, %v373
        %v376 = vmul.f32 %v272, %v370
        %v377 = vsub.f32 %v319, %v376
        %v378 = vmul.f32 %v372, %v377
        %v381 = vunpack.c.l.s4 839922192
        %v382 = vunpack.c.0.s8 %v381
        %v383 = vperm.slane %v375, %v382
        %v385 = vmul.f32 %v252, %v383
        %v388 = vunpack.c.l.s4 839922192
        %v389 = vunpack.c.0.s8 %v388
        %v390 = vperm.slane %v378, %v389
        %v392 = vadd.f32 %v385, %v390
        %393 = vst [vmem:[%s251] sm:$0xff] %v392
        %s394 = sand.u32 %s123, 1
        %s395 = scalar_lea.sflag [#allocation5], %s394
        %s396 = sand.u32 %s123, 1
        %s397 = smul.addr %s396, 8
        %s398 = scalar_lea.vmem [#allocation8], %s397
        // Predicated region
        $region41: #{tpu_custom_call.1} parent=31 // pred_check
          %p399 = pneg %p133
        $region42: #{tpu_custom_call.1} parent=31 // pred_check_branch
          %401 = sbr.rel (%p399) target = $region44
        $region43: #{tpu_custom_call.1} parent=31 // pred_region
          %403 = vsyncadd %s395, 0
          %s404 = smul.addr %s29, 2
          %s405 = smul.addr %s28, 2
          %s406 = sadd.s32 %s404, %s405
          %s407 = smul.addr %s406, 4
          %s408 = scalar_lea.hbm %s3, %s407
          %s410 = sshll.u32 %s398, 4
          %s411 = int_to_ptr.vmem [resolvable:$true] %s410
          %s412 = sshll.u32 %s408, 4
          %s413 = int_to_ptr.hbm [resolvable:$true] %s412
          %415 = dma.vmem_to_hbm [thread:$0]  %s411, 128, %s413, %s395
        $region44: #{tpu_custom_call.1} parent=31 // pred_fallthru
          _
      $region32: #{tpu_custom_call.1} parent=5 // pred_fallthru
        _
      %p416 = scmp.le.s32.totalorder 2, %s19
      // Predicated region
      $region45: #{tpu_custom_call.1} parent=5 // pred_check
        %p417 = pneg %p416
      $region46: #{tpu_custom_call.1} parent=5 // pred_check_branch
        %419 = sbr.rel (%p417) target = $region48
      $region47: #{tpu_custom_call.1} parent=5 // pred_region
        %s420 = ssub.s32 %s19, 2
        // Predicated region
        $region49: #{tpu_custom_call.1} parent=47 // pred_check
          %p421 = pneg %p139
        $region50: #{tpu_custom_call.1} parent=47 // pred_check_branch
          %423 = sbr.rel (%p421) target = $region52
        $region51: #{tpu_custom_call.1} parent=47 // pred_region
          %s424 = sand.u32 %s124, 1
          %s425 = scalar_lea.sflag [#allocation5], %s424
          %s426 = sand.u32 %s124, 1
          %s427 = smul.addr %s426, 8
          %s428 = scalar_lea.vmem [#allocation8], %s427
          %430 = dma.done %s425, 128
        $region52: #{tpu_custom_call.1} parent=47 // pred_fallthru
          _
      $region48: #{tpu_custom_call.1} parent=5 // pred_fallthru
        _
    $region6: #{tpu_custom_call.1} parent=1 // loop_footer
      %s23 = sadd.s32 1, %s19
    $region7: #{tpu_custom_call.1} parent=1 // loop_footer_branch
      %18 = sbr.rel target = $region3
    $region8: #{tpu_custom_call.1} parent=1 // loop_exit
      _
    %431 = vsyncpa [#allocation4], 1
    %s432 = scalar_lea.sflag [#allocation4], 1
    %433 = vsyncpa %s432, 1
    %434 = vsyncpa [#allocation7], 1
    %s435 = scalar_lea.sflag [#allocation7], 1
    %436 = vsyncpa %s435, 1
    %437 = vsyncpa [#allocation5], 1
    %s438 = scalar_lea.sflag [#allocation5], 1
    %439 = vsyncpa %s438, 1

</llo_original>
